<compile_context>
chip_gen: v5e
topology: v5e:2x2
jax: 0.10.0
libtpu: 0.0.40
codegen_flags: <defaults>
</compile_context>

<pallas_src>
import functools

import jax
import jax.numpy as jnp
from jax.experimental import pallas as pl
from jax.experimental.pallas import tpu as pltpu


def _round_up(x, m):
    return (x + m - 1) // m * m


def _log_sigmoid(x):
    # Numerically stable log(sigmoid(x)) = min(x, 0) - log1p(exp(-|x|))
    return jnp.minimum(x, 0.0) - jnp.log1p(jnp.exp(-jnp.abs(x)))


def _loss_kernel(word_ref, pos_ref, neg_ref, out_ref, *, total_b, block_b, num_neg):
    i = pl.program_id(0)

    w = word_ref[...].astype(jnp.float32)   # (Bt, D)
    p = pos_ref[...].astype(jnp.float32)    # (Bt, D)

    # positive dot products: (Bt, 1)
    pos_dot = jnp.sum(w * p, axis=1, keepdims=True)

    # sum_{k,d} neg[b,k,d]*w[b,d]: negatives arrive lane-dense as (Bt, K*D); one
    # tile of w (done once per block), one VPU multiply, one lane reduce.
    neg = neg_ref[...].astype(jnp.float32)          # (Bt, K*D)
    w_tiled = jnp.tile(w, (1, num_neg))             # (Bt, K*D)
    neg_sum = jnp.sum(neg * w_tiled, axis=1, keepdims=True)   # (Bt, 1)

    per_row = _log_sigmoid(pos_dot) + _log_sigmoid(-neg_sum)  # (Bt, 1)

    # Mask out rows past the true batch size (partial last block): jnp.where selects,
    # so any garbage/NaN in the out-of-bounds region is discarded before the sum.
    row = i * block_b + jax.lax.broadcasted_iota(jnp.int32, (block_b, 1), 0)
    per_row = jnp.where(row < total_b, per_row, 0.0)

    # Per-block partial sum of log-sigmoids; wrapper negates the grand total.
    out_ref[...] = jnp.sum(per_row).reshape(1, 1, 1)


def loss_pallas(word_vec, positive_vec, negatives_vecs, *, block_b=None):
    B, D = word_vec.shape
    Bn, K, Dn = negatives_vecs.shape
    assert Bn == B and Dn == D

    lane = 128
    rd = _round_up(D, lane)          # lane-padded word/pos row
    rkd = _round_up(K * D, lane)     # lane-padded negatives row

    # Per-generation VMEM capacity (fall back to the smallest, v7x-style 64 MiB).
    try:
        info = pltpu.get_tpu_info()
        vmem_cap = int(getattr(info, "vmem_capacity_bytes", 64 * 1024 * 1024))
    except Exception:  # pragma: no cover - defensive; keeps the conservative default
        vmem_cap = 64 * 1024 * 1024

    if vmem_cap >= 96 * 1024 * 1024:      # 128 MiB parts: v5e / v6e
        vmem_limit = 96 * 1024 * 1024
    else:                                 # 64 MiB parts: v7x
        vmem_limit = 48 * 1024 * 1024

    if block_b is None:
        # Budget = double-buffered f32-sized input blocks + block-sized f32 temporaries
        # (upcast w/p, tiled w, upcast neg, neg*w product), all lane-padded to 128.
        bytes_per_row = 4 * (2 * (2 * rd + rkd)      # double-buffered input blocks
                             + (2 * rd + 3 * rkd))   # per-block intermediates
        budget = int(vmem_limit * 3) // 4            # leave explicit headroom
        block_b = budget // bytes_per_row

    # Guarantee >= 2 grid steps so the "parallel" batch axis can use both v7x TCs.
    block_b = min(block_b, _round_up(pl.cdiv(B, 2), 8))
    block_b = min(block_b, _round_up(B, 8))
    block_b = max(8, (block_b // 8) * 8)             # sublane multiple

    num_blocks = pl.cdiv(B, block_b)                 # last block may be partial (masked)

    # Free contiguous reshape -> lane-dense last dim for the negatives stream.
    neg_flat = negatives_vecs.reshape(B, K * D)

    kernel = functools.partial(_loss_kernel, total_b=B, block_b=block_b, num_neg=K)

    partials = pl.pallas_call(
        kernel,
        out_shape=jax.ShapeDtypeStruct((num_blocks, 1, 1), jnp.float32),
        grid_spec=pltpu.PrefetchScalarGridSpec(
            num_scalar_prefetch=0,
            grid=(num_blocks,),
            in_specs=[
                pl.BlockSpec((block_b, D), lambda i: (i, 0)),
                pl.BlockSpec((block_b, D), lambda i: (i, 0)),
                pl.BlockSpec((block_b, K * D), lambda i: (i, 0)),
            ],
            out_specs=pl.BlockSpec((1, 1, 1), lambda i: (i, 0, 0)),
        ),
        compiler_params=pltpu.CompilerParams(
            # Each grid step owns its own output block -> batch axis can be sharded
            # across TensorCores on v7x; single-TC chips are unaffected.
            dimension_semantics=("parallel",),
            vmem_limit_bytes=vmem_limit,
        ),
    )(word_vec, positive_vec, neg_flat)

    return -jnp.sum(partials)


def loss_ref(word_vec, positive_vec, negatives_vecs):
    w = word_vec.astype(jnp.float32)
    p = positive_vec.astype(jnp.float32)
    n = negatives_vecs.astype(jnp.float32)
    pos_dot = jnp.sum(w * p, axis=1)
    neg_sum = jnp.einsum("bkd,bd->b", n, w)
    return -(jnp.sum(_log_sigmoid(pos_dot)) + jnp.sum(_log_sigmoid(-neg_sum)))


if __name__ == "__main__":
    B, K, D = 16, 8, 32  # batch, num negatives, embedding dim
    key = jax.random.PRNGKey(0)
    kw, kp, kn = jax.random.split(key, 3)
    word_vec = jax.random.normal(kw, (B, D), dtype=jnp.float32) * 0.5
    positive_vec = jax.random.normal(kp, (B, D), dtype=jnp.float32) * 0.5
    negatives_vecs = jax.random.normal(kn, (B, K, D), dtype=jnp.float32) * 0.5

    out = loss_pallas(word_vec, positive_vec, negatives_vecs)
    out = jax.block_until_ready(out)
    ref = loss_ref(word_vec, positive_vec, negatives_vecs)
    assert jnp.allclose(out, ref, rtol=1e-5, atol=1e-5), (out, ref)

    # Also exercise the multi-block path with a partial (masked) last block, no padding.
    B2 = 100
    kw2, kp2, kn2 = jax.random.split(jax.random.PRNGKey(1), 3)
    w2 = jax.random.normal(kw2, (B2, D), dtype=jnp.float32) * 0.5
    p2 = jax.random.normal(kp2, (B2, D), dtype=jnp.float32) * 0.5
    n2 = jax.random.normal(kn2, (B2, K, D), dtype=jnp.float32) * 0.5
    out2 = jax.block_until_ready(loss_pallas(w2, p2, n2, block_b=32))
    ref2 = loss_ref(w2, p2, n2)
    assert jnp.allclose(out2, ref2, rtol=1e-5, atol=1e-5), (out2, ref2)

    # bf16 inputs flow through without a wrapper-side f32 materialization (kernel upcasts).
    w3 = word_vec.astype(jnp.bfloat16)
    p3 = positive_vec.astype(jnp.bfloat16)
    n3 = negatives_vecs.astype(jnp.bfloat16)
    out3 = jax.block_until_ready(loss_pallas(w3, p3, n3))
    ref3 = loss_ref(w3, p3, n3)
    assert jnp.allclose(out3, ref3, rtol=2e-2, atol=2e-2), (out3, ref3)

    print("KERNEL_OK")
</pallas_src>

<mosaic_0001>
module attributes {stable_mosaic.version = 11 : i64} {
  func.func @_loss_kernel(%arg0: i32, %arg1: memref<8x32xf32, #tpu.memory_space<vmem>>, %arg2: memref<8x32xf32, #tpu.memory_space<vmem>>, %arg3: memref<8x256xf32, #tpu.memory_space<vmem>>, %arg4: memref<1x1x1xf32, #tpu.memory_space<vmem>>) attributes {dimension_semantics = [#tpu.dimension_semantics<parallel>], iteration_bounds = array<i64: 2>, scalar_prefetch = 0 : i64, scratch_operands = 0 : i64, tpu.core_type = #tpu.core_type<tc>, window_params = [{transform_indices = @transform_0, window_bounds = array<i64: 8, 32>}, {transform_indices = @transform_1, window_bounds = array<i64: 8, 32>}, {transform_indices = @transform_2, window_bounds = array<i64: 8, 256>}, {transform_indices = @transform_3, window_bounds = array<i64: 1, 1, 1>}]} {
    %c0 = arith.constant 0 : index
    %c0_0 = arith.constant 0 : index
    %0 = vector.load %arg1[%c0, %c0_0] : memref<8x32xf32, #tpu.memory_space<vmem>>, vector<8x32xf32>
    %c0_1 = arith.constant 0 : index
    %c0_2 = arith.constant 0 : index
    %1 = vector.load %arg2[%c0_1, %c0_2] : memref<8x32xf32, #tpu.memory_space<vmem>>, vector<8x32xf32>
    %2 = arith.mulf %0, %1 : vector<8x32xf32>
    %cst = arith.constant dense<0.000000e+00> : vector<8xf32>
    %3 = vector.multi_reduction <add>, %2, %cst [1] : vector<8x32xf32> to vector<8xf32>
    %4 = vector.shape_cast %3 : vector<8xf32> to vector<8x1xf32>
    %c0_3 = arith.constant 0 : index
    %c0_4 = arith.constant 0 : index
    %5 = vector.load %arg3[%c0_3, %c0_4] : memref<8x256xf32, #tpu.memory_space<vmem>>, vector<8x256xf32>
    %6 = tpu.concatenate %0, %0, %0, %0, %0, %0, %0, %0 in 1 : vector<8x32xf32>, vector<8x32xf32>, vector<8x32xf32>, vector<8x32xf32>, vector<8x32xf32>, vector<8x32xf32>, vector<8x32xf32>, vector<8x32xf32> -> vector<8x256xf32>
    %7 = arith.mulf %5, %6 : vector<8x256xf32>
    %cst_5 = arith.constant dense<0.000000e+00> : vector<8xf32>
    %8 = vector.multi_reduction <add>, %7, %cst_5 [1] : vector<8x256xf32> to vector<8xf32>
    %9 = vector.shape_cast %8 : vector<8xf32> to vector<8x1xf32>
    %cst_6 = arith.constant 0.000000e+00 : f32
    %10 = vector.broadcast %cst_6 : f32 to vector<8x1xf32>
    %11 = arith.minimumf %4, %10 : vector<8x1xf32>
    %12 = math.absf %4 : vector<8x1xf32>
    %cst_7 = arith.constant 0.000000e+00 : f32
    %13 = vector.broadcast %cst_7 : f32 to vector<8x1xf32>
    %14 = arith.subf %13, %12 : vector<8x1xf32>
    %15 = math.exp %14 : vector<8x1xf32>
    %16 = math.log1p %15 : vector<8x1xf32>
    %17 = arith.subf %11, %16 : vector<8x1xf32>
    %cst_8 = arith.constant 0.000000e+00 : f32
    %18 = vector.broadcast %cst_8 : f32 to vector<8x1xf32>
    %19 = arith.subf %18, %9 : vector<8x1xf32>
    %cst_9 = arith.constant 0.000000e+00 : f32
    %20 = vector.broadcast %cst_9 : f32 to vector<8x1xf32>
    %21 = arith.minimumf %19, %20 : vector<8x1xf32>
    %22 = math.absf %19 : vector<8x1xf32>
    %cst_10 = arith.constant 0.000000e+00 : f32
    %23 = vector.broadcast %cst_10 : f32 to vector<8x1xf32>
    %24 = arith.subf %23, %22 : vector<8x1xf32>
    %25 = math.exp %24 : vector<8x1xf32>
    %26 = math.log1p %25 : vector<8x1xf32>
    %27 = arith.subf %21, %26 : vector<8x1xf32>
    %28 = arith.addf %17, %27 : vector<8x1xf32>
    %c8_i32 = arith.constant 8 : i32
    %29 = arith.muli %arg0, %c8_i32 : i32
    %30 = tpu.iota {dimensions = array<i32: 0>} : vector<8x1xi32>
    %31 = vector.broadcast %29 : i32 to vector<8x1xi32>
    %32 = arith.addi %31, %30 : vector<8x1xi32>
    %c16_i32 = arith.constant 16 : i32
    %33 = vector.broadcast %c16_i32 : i32 to vector<8x1xi32>
    %34 = arith.cmpi slt, %32, %33 : vector<8x1xi32>
    %cst_11 = arith.constant 0.000000e+00 : f32
    %35 = vector.broadcast %cst_11 : f32 to vector<8x1xf32>
    %36 = arith.select %34, %28, %35 : vector<8x1xi1>, vector<8x1xf32>
    %37 = vector.shape_cast %36 : vector<8x1xf32> to vector<1x8x1xf32>
    %cst_12 = arith.constant dense<0.000000e+00> : vector<1xf32>
    %38 = vector.multi_reduction <add>, %37, %cst_12 [1, 2] : vector<1x8x1xf32> to vector<1xf32>
    %39 = vector.shape_cast %38 : vector<1xf32> to vector<1x1x1xf32>
    %40 = vector.extract %39[0, 0, 0] : f32 from vector<1x1x1xf32>
    %41 = vector.broadcast %40 : f32 to vector<1x1x1xf32>
    %c0_13 = arith.constant 0 : index
    %c0_14 = arith.constant 0 : index
    %c0_15 = arith.constant 0 : index
    %42 = vector.load %arg4[%c0_13, %c0_14, %c0_15] : memref<1x1x1xf32, #tpu.memory_space<vmem>>, vector<1x1x1xf32>
    tpu.vector_store %arg4[%c0_13, %c0_14, %c0_15], %41 {strides = array<i32>} : memref<1x1x1xf32, #tpu.memory_space<vmem>>, vector<1x1x1xf32>,
    return
  }
  func.func @transform_0(%arg0: i32) -> (i32, i32) {
    %c0_i32 = arith.constant 0 : i32
    %c0_i32_0 = arith.constant 0 : i32
    return %arg0, %c0_i32 : i32, i32
  }
  func.func @transform_1(%arg0: i32) -> (i32, i32) {
    %c0_i32 = arith.constant 0 : i32
    %c0_i32_0 = arith.constant 0 : i32
    return %arg0, %c0_i32 : i32, i32
  }
  func.func @transform_2(%arg0: i32) -> (i32, i32) {
    %c0_i32 = arith.constant 0 : i32
    %c0_i32_0 = arith.constant 0 : i32
    return %arg0, %c0_i32 : i32, i32
  }
  func.func @transform_3(%arg0: i32) -> (i32, i32, i32) {
    %c0_i32 = arith.constant 0 : i32
    %c0_i32_0 = arith.constant 0 : i32
    %c0_i32_1 = arith.constant 0 : i32
    return %arg0, %c0_i32, %c0_i32_0 : i32, i32, i32
  }
}

</mosaic_0001>

<llo_original>
// kernel: tpu_custom_call.1
$region0: #{tpu_custom_call.1}
  #allocation0 [shape = 'u32[]', space=smem, size = 0x4, offset = 0x4, fixed_abs, tag = 'smem constant byte address 0x4 - core index']
  #allocation1 [shape = 'u32[72,128]{1,0:T(1,128)}', space=vmem, size = 0x9000, scoped, tag = 'internal scratch']
  %s0 = inlined_call_operand.hbm [shape: f32[16,32], index: 0, kind: input, shape index: {}]
  %s1 = inlined_call_operand.hbm [shape: f32[16,32], index: 1, kind: input, shape index: {}]
  %s2 = inlined_call_operand.hbm [shape: f32[16,256], index: 2, kind: input, shape index: {}]
  %s3 = inlined_call_operand.vmem [shape: f32[2,1,1], index: 3, kind: output, shape index: {}]
  %s4 = sld [smem:[#allocation0]]
  $region57: #{tpu_custom_call.1} parent=0
    _
  %s6 = ssub.s32 1, %s4
  %s7 = scalar_select 0, %s6, %s4
  $region1: #{tpu_custom_call.1} parent=0
    #allocation2 [shape = 'u8[8192]{0}', space=vmem, size = 0x2000, scoped, tag = 'input window, operand 0']
    #allocation3 [shape = 's32[2]{0}', space=sflag, size = 0x8, scoped, tag = 'scoped memory for tpu_custom_call.1']
    #allocation4 [shape = 'u8[8192]{0}', space=vmem, size = 0x2000, scoped, tag = 'input window, operand 1']
    #allocation5 [shape = 's32[2]{0}', space=sflag, size = 0x8, scoped, tag = 'scoped memory for tpu_custom_call.1']
    #allocation6 [shape = 'u8[16384]{0}', space=vmem, size = 0x4000, scoped, tag = 'input window, operand 2']
    %8 = vsyncpa [#allocation3], 0
    %s9 = scalar_lea.sflag [#allocation3], 1
    %10 = vsyncpa %s9, 0
    %11 = vsyncpa [#allocation5], 0
    %s12 = scalar_lea.sflag [#allocation5], 1
    %13 = vsyncpa %s12, 0
    loop: start=0, step=1, limit=4
    $region2: #{tpu_custom_call.1} parent=1 // loop_pre_header
      _
    $region3: #{tpu_custom_call.1} parent=1 // loop_header
      %s15 = sphi 0, %s19
      %p16 = scmp.ge.s32.totalorder %s15, 4
      %s25 = sphi 0, %s27
      %s28 = sphi 0, %s25
      %s29 = sphi 0, %s28
      %s45 = sphi 0, %s29
      %s51 = sphi 0, %s53
      %s54 = sphi 0, %s51
      %s55 = sphi 0, %s54
      %s71 = sphi 0, %s55
      %s77 = sphi 0, %s79
      %s80 = sphi 0, %s77
      %s81 = sphi 0, %s80
      %s97 = sphi 0, %s81
      %s103 = sphi 0, %s105
      %s106 = sphi 0, %s103
      %s107 = sphi 0, %s106
      %s123 = sphi 0, %s107
    $region4: #{tpu_custom_call.1} parent=1 // loop_header_branch
      %18 = sbr.rel (%p16) target = $region8
    $region5: #{tpu_custom_call.1} parent=1 // loop_body
      %s20 = ssub.s32 %s15, 1
      %s21 = ssub.s32 %s15, 2
      %s22 = sadd.s32 %s15, 1
      %s23 = ssub.s32 %s15, %s22
      %p24 = scmp.eq.s32.totalorder %s23, 0
      %s26 = sadd.s32 %s25, 1
      %s27 = scalar_select %p24, %s25, %s26
      %p30 = pneg %p24
      %p31 = scmp.eq.s32.totalorder %s15, 1
      %p32 = por %p30, %p31
      %p33 = scmp.ne.s32.totalorder %s25, %s28
      %p34 = scmp.eq.s32.totalorder %s15, 0
      %p35 = por %p33, %p34
      %p36 = scmp.ne.s32.totalorder %s25, %s28
      %p37 = scmp.eq.s32.totalorder %s20, 1
      %p38 = por %p36, %p37
      %p39 = scmp.ne.s32.totalorder %s28, %s29
      %p40 = scmp.eq.s32.totalorder %s20, 0
      %p41 = por %p39, %p40
      %p42 = scmp.ne.s32.totalorder %s28, %s29
      %p43 = scmp.eq.s32.totalorder %s21, 1
      %p44 = por %p42, %p43
      %p46 = scmp.ne.s32.totalorder %s29, %s45
      %p47 = scmp.eq.s32.totalorder %s21, 0
      %p48 = por %p46, %p47
      %s49 = ssub.s32 %s15, %s22
      %p50 = scmp.eq.s32.totalorder %s49, 0
      %s52 = sadd.s32 %s51, 1
      %s53 = scalar_select %p50, %s51, %s52
      %p56 = pneg %p50
      %p57 = scmp.eq.s32.totalorder %s15, 1
      %p58 = por %p56, %p57
      %p59 = scmp.ne.s32.totalorder %s51, %s54
      %p60 = scmp.eq.s32.totalorder %s15, 0
      %p61 = por %p59, %p60
      %p62 = scmp.ne.s32.totalorder %s51, %s54
      %p63 = scmp.eq.s32.totalorder %s20, 1
      %p64 = por %p62, %p63
      %p65 = scmp.ne.s32.totalorder %s54, %s55
      %p66 = scmp.eq.s32.totalorder %s20, 0
      %p67 = por %p65, %p66
      %p68 = scmp.ne.s32.totalorder %s54, %s55
      %p69 = scmp.eq.s32.totalorder %s21, 1
      %p70 = por %p68, %p69
      %p72 = scmp.ne.s32.totalorder %s55, %s71
      %p73 = scmp.eq.s32.totalorder %s21, 0
      %p74 = por %p72, %p73
      %s75 = ssub.s32 %s15, %s22
      %p76 = scmp.eq.s32.totalorder %s75, 0
      %s78 = sadd.s32 %s77, 1
      %s79 = scalar_select %p76, %s77, %s78
      %p82 = pneg %p76
      %p83 = scmp.eq.s32.totalorder %s15, 1
      %p84 = por %p82, %p83
      %p85 = scmp.ne.s32.totalorder %s77, %s80
      %p86 = scmp.eq.s32.totalorder %s15, 0
      %p87 = por %p85, %p86
      %p88 = scmp.ne.s32.totalorder %s77, %s80
      %p89 = scmp.eq.s32.totalorder %s20, 1
      %p90 = por %p88, %p89
      %p91 = scmp.ne.s32.totalorder %s80, %s81
      %p92 = scmp.eq.s32.totalorder %s20, 0
      %p93 = por %p91, %p92
      %p94 = scmp.ne.s32.totalorder %s80, %s81
      %p95 = scmp.eq.s32.totalorder %s21, 1
      %p96 = por %p94, %p95
      %p98 = scmp.ne.s32.totalorder %s81, %s97
      %p99 = scmp.eq.s32.totalorder %s21, 0
      %p100 = por %p98, %p99
      %s101 = ssub.s32 %s15, %s22
      %p102 = scmp.eq.s32.totalorder %s101, 0
      %s104 = sadd.s32 %s103, 1
      %s105 = scalar_select %p102, %s103, %s104
      %p108 = pneg %p102
      %p109 = scmp.eq.s32.totalorder %s15, 1
      %p110 = por %p108, %p109
      %p111 = scmp.ne.s32.totalorder %s103, %s106
      %p112 = scmp.eq.s32.totalorder %s15, 0
      %p113 = por %p111, %p112
      %p114 = scmp.ne.s32.totalorder %s103, %s106
      %p115 = scmp.eq.s32.totalorder %s20, 1
      %p116 = por %p114, %p115
      %p117 = scmp.ne.s32.totalorder %s106, %s107
      %p118 = scmp.eq.s32.totalorder %s20, 0
      %p119 = por %p117, %p118
      %p120 = scmp.ne.s32.totalorder %s106, %s107
      %p121 = scmp.eq.s32.totalorder %s21, 1
      %p122 = por %p120, %p121
      %p124 = scmp.ne.s32.totalorder %s107, %s123
      %p125 = scmp.eq.s32.totalorder %s21, 0
      %p126 = por %p124, %p125
      %p127 = scmp.le.s32.totalorder 1, %s15
      %p128 = scmp.lt.s32.totalorder %s15, 3
      %p129 = pnand %p127, %p128
      %p130 = pneg %p129
      // Predicated region
      $region9: #{tpu_custom_call.1} parent=5 // pred_check
        _
      $region10: #{tpu_custom_call.1} parent=5 // pred_check_branch
        %132 = sbr.rel (%p129) target = $region12
      $region11: #{tpu_custom_call.1} parent=5 // pred_region
        %s133 = ssub.s32 %s15, 1
      $region12: #{tpu_custom_call.1} parent=5 // pred_fallthru
        _
      %p134 = scmp.lt.s32.totalorder %s15, 2
      // Predicated region
      $region13: #{tpu_custom_call.1} parent=5 // pred_check
        %p135 = pneg %p134
      $region14: #{tpu_custom_call.1} parent=5 // pred_check_branch
        %137 = sbr.rel (%p135) target = $region16
      $region15: #{tpu_custom_call.1} parent=5 // pred_region
        // Predicated region
        $region17: #{tpu_custom_call.1} parent=15 // pred_check
          %p138 = pneg %p35
        $region18: #{tpu_custom_call.1} parent=15 // pred_check_branch
          %140 = sbr.rel (%p138) target = $region20
        $region19: #{tpu_custom_call.1} parent=15 // pred_region
          %s141 = sand.u32 %s25, 1
          %s142 = scalar_lea.sflag [#allocation3], %s141
          %s143 = sand.u32 %s25, 1
          %s144 = smul.addr %s143, 8
          %s145 = scalar_lea.vmem [#allocation2], %s144
          %147 = vsyncadd %s142, 0
          %s148 = smul.addr %s15, 8
          %s149 = scalar_lea.hbm %s0, %s148
          %s151 = sshll.u32 %s149, 4
          %s152 = int_to_ptr.hbm [resolvable:$true] %s151
          %s153 = sshll.u32 %s145, 4
          %s154 = int_to_ptr.vmem [resolvable:$true] %s153
          %156 = dma.hbm_to_vmem [thread:$0]  %s152, 128, %s154, %s142
        $region20: #{tpu_custom_call.1} parent=15 // pred_fallthru
          _
        // Predicated region
        $region21: #{tpu_custom_call.1} parent=15 // pred_check
          %p157 = pneg %p61
        $region22: #{tpu_custom_call.1} parent=15 // pred_check_branch
          %159 = sbr.rel (%p157) target = $region24
        $region23: #{tpu_custom_call.1} parent=15 // pred_region
          %s160 = sand.u32 %s15, 1
          %s161 = scalar_lea.sflag [#allocation5], %s160
          %s162 = sand.u32 %s51, 1
          %s163 = smul.addr %s162, 8
          %s164 = scalar_lea.vmem [#allocation4], %s163
          %166 = vsyncadd %s161, 0
          %s167 = smul.addr %s15, 8
          %s168 = scalar_lea.hbm %s1, %s167
          %s170 = sshll.u32 %s168, 4
          %s171 = int_to_ptr.hbm [resolvable:$true] %s170
          %s172 = sshll.u32 %s164, 4
          %s173 = int_to_ptr.vmem [resolvable:$true] %s172
          %175 = dma.hbm_to_vmem [thread:$0]  %s171, 128, %s173, %s161
        $region24: #{tpu_custom_call.1} parent=15 // pred_fallthru
          _
        // Predicated region
        $region25: #{tpu_custom_call.1} parent=15 // pred_check
          %p176 = pneg %p87
        $region26: #{tpu_custom_call.1} parent=15 // pred_check_branch
          %178 = sbr.rel (%p176) target = $region28
        $region27: #{tpu_custom_call.1} parent=15 // pred_region
          %s179 = sand.u32 %s15, 1
          %s180 = scalar_lea.sflag [#allocation5], %s179
          %s181 = sand.u32 %s77, 1
          %s182 = smul.addr %s181, 16
          %s183 = scalar_lea.vmem [#allocation6], %s182
          %185 = vsyncadd %s180, 0
          %s186 = smul.addr %s15, 2
          %s187 = smul.addr %s186, 8
          %s188 = scalar_lea.hbm %s2, %s187
          %s190 = sshll.u32 %s188, 4
          %s191 = int_to_ptr.hbm [resolvable:$true] %s190
          %s192 = sshll.u32 %s183, 4
          %s193 = int_to_ptr.vmem [resolvable:$true] %s192
          %195 = dma.hbm_to_vmem [thread:$0]  %s191, 256, %s193, %s180
        $region28: #{tpu_custom_call.1} parent=15 // pred_fallthru
          _
      $region16: #{tpu_custom_call.1} parent=5 // pred_fallthru
        _
      %p196 = scmp.le.s32.totalorder 1, %s15
      %p197 = scmp.lt.s32.totalorder %s15, 3
      %p198 = pnand %p196, %p197
      %p199 = pneg %p198
      // Predicated region
      $region29: #{tpu_custom_call.1} parent=5 // pred_check
        _
      $region30: #{tpu_custom_call.1} parent=5 // pred_check_branch
        %201 = sbr.rel (%p198) target = $region32
      $region31: #{tpu_custom_call.1} parent=5 // pred_region
        %s202 = ssub.s32 %s15, 1
        %s203 = sand.u32 %s28, 1
        %s204 = scalar_lea.sflag [#allocation3], %s203
        %s205 = sand.u32 %s28, 1
        %s206 = smul.addr %s205, 8
        %s207 = scalar_lea.vmem [#allocation2], %s206
        // Predicated region
        $region33: #{tpu_custom_call.1} parent=31 // pred_check
          %p208 = pneg %p41
        $region34: #{tpu_custom_call.1} parent=31 // pred_check_branch
          %210 = sbr.rel (%p208) target = $region36
        $region35: #{tpu_custom_call.1} parent=31 // pred_region
          %212 = dma.done %s204, 128
        $region36: #{tpu_custom_call.1} parent=31 // pred_fallthru
          _
        %s213 = sand.u32 %s20, 1
        %s214 = scalar_lea.sflag [#allocation5], %s213
        %s215 = sand.u32 %s54, 1
        %s216 = smul.addr %s215, 8
        %s217 = scalar_lea.vmem [#allocation4], %s216
        // Predicated region
        $region37: #{tpu_custom_call.1} parent=31 // pred_check
          %p218 = pneg %p67
        $region38: #{tpu_custom_call.1} parent=31 // pred_check_branch
          %220 = sbr.rel (%p218) target = $region40
        $region39: #{tpu_custom_call.1} parent=31 // pred_region
          %222 = dma.done %s214, 128
        $region40: #{tpu_custom_call.1} parent=31 // pred_fallthru
          _
        %s223 = sand.u32 %s20, 1
        %s224 = scalar_lea.sflag [#allocation5], %s223
        %s225 = sand.u32 %s80, 1
        %s226 = smul.addr %s225, 16
        %s227 = scalar_lea.vmem [#allocation6], %s226
        // Predicated region
        $region41: #{tpu_custom_call.1} parent=31 // pred_check
          %p228 = pneg %p93
        $region42: #{tpu_custom_call.1} parent=31 // pred_check_branch
          %230 = sbr.rel (%p228) target = $region44
        $region43: #{tpu_custom_call.1} parent=31 // pred_region
          %232 = dma.done %s224, 256
        $region44: #{tpu_custom_call.1} parent=31 // pred_fallthru
          _
        %s233 = sand.u32 %s28, 1
        %s234 = scalar_lea.sflag [#allocation3], %s233
        %s235 = sand.u32 %s28, 1
        %s236 = smul.addr %s235, 8
        %s237 = scalar_lea.vmem [#allocation2], %s236
        %p238 = pneg %p41
        %p239 = pneg %p38
        %s240 = sand.u32 %s20, 1
        %s241 = scalar_lea.sflag [#allocation5], %s240
        %s242 = sand.u32 %s54, 1
        %s243 = smul.addr %s242, 8
        %s244 = scalar_lea.vmem [#allocation4], %s243
        %p245 = pneg %p67
        %p246 = pneg %p64
        %s247 = sand.u32 %s20, 1
        %s248 = scalar_lea.sflag [#allocation5], %s247
        %s249 = sand.u32 %s80, 1
        %s250 = smul.addr %s249, 16
        %s251 = scalar_lea.vmem [#allocation6], %s250
        %p252 = pneg %p93
        %p253 = pneg %p90
        %p254 = pneg %p119
        %p255 = pneg %p116
        %p256 = scmp.lt.s32.totalorder %s20, 1
        %s257 = scalar_select %p256, %s20, 1
        %s258 = scalar_lea.vmem %s3, %s257
        %p259 = scmp.lt.s32.totalorder %s20, 1
        %s260 = scalar_select %p259, %s20, 1
        %s261 = scalar_lea.vmem %s3, %s260
        %v262 = vld [vmem:[%s207] sm:$0xff]
        %v263 = vld [vmem:[%s217] sm:$0xff]
        %v264 = vmul.f32 %v262, %v263
        %vm265 = vcmask 261120
        %v266 = vsel %vm265, %v264, 0.0
        %267 = vadd.xlane.f32.xlu0 %v266
        %v268 = vpop.xlane.xlu0 %267
        %v269 = vld [vmem:[%s227] sm:$0xff]
        %v270 = vld [vmem:[%s227 + $0x8] sm:$0xff]
        %272 = vrot.lane.b32.xlu0 %v262, 32
        %v273 = vpop.permute.xlu0 %272
        %275 = vrot.lane.b32.xlu0 %v262, 64
        %v276 = vpop.permute.xlu0 %275
        %278 = vrot.lane.b32.xlu0 %v262, 96
        %v279 = vpop.permute.xlu0 %278
        %v281 = vsel %vm265, %v262, %v273
        %vm282 = vcmask 523264
        %v283 = vsel %vm282, %v281, %v276
        %vm284 = vcmask 785408
        %v285 = vsel %vm284, %v283, %v279
        %v286 = vmul.f32 %v269, %v285
        %v287 = vmul.f32 %v270, %v285
        %v288 = vadd.f32 %v286, %v287
        %289 = vadd.xlane.f32.xlu0 %v288
        %v290 = vpop.xlane.xlu0 %289
        %v291 = vmin.f32 %v268, 0.0
        %v292 = vand.u32 2147483647, %v268
        %v293 = vsub.f32 0.0, %v292
        %v294 = vmul.f32 %v293, 1.442695
        %v295 = vpow.pop %v294
        %v296 = vadd.f32 %v295, 1.0
        %v297 = vlog2.pop %v296
        %v298 = vmul.f32 %v297, 0.6931472
        %v299 = vmul.f32 -0.5, %v295
        %v300 = vadd.f32 %v299, 1.0
        %v301 = vmul.f32 %v300, %v295
        %v302 = vand.u32 2147483647, %v295
        %vm303 = vcmp.lt.f32.partialorder %v302, 0.0004427343
        %v304 = vsel %vm303, %v301, %v298
        %v305 = vsub.f32 %v291, %v304
        %v306 = vsub.f32 0.0, %v290
        %v307 = vmin.f32 %v306, 0.0
        %v308 = vand.u32 2147483647, %v306
        %v309 = vsub.f32 0.0, %v308
        %v310 = vmul.f32 %v309, 1.442695
        %v311 = vpow.pop %v310
        %v312 = vadd.f32 %v311, 1.0
        %v313 = vlog2.pop %v312
        %v314 = vmul.f32 %v313, 0.6931472
        %v315 = vmul.f32 -0.5, %v311
        %v316 = vadd.f32 %v315, 1.0
        %v317 = vmul.f32 %v316, %v311
        %v318 = vand.u32 2147483647, %v311
        %vm319 = vcmp.lt.f32.partialorder %v318, 0.0004427343
        %v320 = vsel %vm319, %v317, %v314
        %v321 = vsub.f32 %v307, %v320
        %v322 = vadd.f32 %v305, %v321
        %s323 = smul.u32 %s20, 8
        %v324 = vlaneseq
        %v325 = vshrl.u32 %v324, 7
        %v326 = vstv %s323
        %v327 = vadd.s32 %v326, %v325
        %vm328 = vcmp.lt.s32.totalorder %v327, 16
        %v329 = vsel %vm328, %v322, 0.0
        %vm330 = vcmask 7168
        %v331 = vsel %vm330, %v329, 0.0
        %332 = vadd.xlane.f32.xlu0 %v331
        %v333 = vpop.xlane.xlu0 %332
        %v334 = vrot.slane %v333, 4
        %v335 = vadd.f32 %v333, %v334
        %v336 = vrot.slane %v335, 2
        %v337 = vadd.f32 %v335, %v336
        %v338 = vrot.slane %v337, 1
        %v339 = vadd.f32 %v337, %v338
        %s340 = vtos %v339
        %v341 = vstv %s340
        %vm342 = vcmask 0
        %343 = vst.msk [vmem:[%s261] sm:$0x1] %vm342, %v341
        %p344 = scmp.lt.s32.totalorder %s20, 1
        %s345 = scalar_select %p344, %s20, 1
        %s346 = scalar_lea.vmem %s3, %s345
        // Predicated region
        $region45: #{tpu_custom_call.1} parent=31 // pred_check
          %p347 = pneg %p116
        $region46: #{tpu_custom_call.1} parent=31 // pred_check_branch
          %349 = sbr.rel (%p347) target = $region48
        $region47: #{tpu_custom_call.1} parent=31 // pred_region
          _
        $region48: #{tpu_custom_call.1} parent=31 // pred_fallthru
          _
      $region32: #{tpu_custom_call.1} parent=5 // pred_fallthru
        _
      %p350 = scmp.le.s32.totalorder 2, %s15
      // Predicated region
      $region49: #{tpu_custom_call.1} parent=5 // pred_check
        %p351 = pneg %p350
      $region50: #{tpu_custom_call.1} parent=5 // pred_check_branch
        %353 = sbr.rel (%p351) target = $region52
      $region51: #{tpu_custom_call.1} parent=5 // pred_region
        %s354 = ssub.s32 %s15, 2
        // Predicated region
        $region53: #{tpu_custom_call.1} parent=51 // pred_check
          %p355 = pneg %p122
        $region54: #{tpu_custom_call.1} parent=51 // pred_check_branch
          %357 = sbr.rel (%p355) target = $region56
        $region55: #{tpu_custom_call.1} parent=51 // pred_region
          %p358 = scmp.lt.s32.totalorder %s21, 1
          %s359 = scalar_select %p358, %s21, 1
          %s360 = scalar_lea.vmem %s3, %s359
        $region56: #{tpu_custom_call.1} parent=51 // pred_fallthru
          _
      $region52: #{tpu_custom_call.1} parent=5 // pred_fallthru
        _
    $region6: #{tpu_custom_call.1} parent=1 // loop_footer
      %s19 = sadd.s32 1, %s15
    $region7: #{tpu_custom_call.1} parent=1 // loop_footer_branch
      %14 = sbr.rel target = $region3
    $region8: #{tpu_custom_call.1} parent=1 // loop_exit
      _
    %361 = vsyncpa [#allocation3], 1
    %s362 = scalar_lea.sflag [#allocation3], 1
    %363 = vsyncpa %s362, 1
    %364 = vsyncpa [#allocation5], 1
    %s365 = scalar_lea.sflag [#allocation5], 1
    %366 = vsyncpa %s365, 1

</llo_original>
